<compile_context>
chip_gen: v5e
topology: v5e:2x2
jax: 0.10.0
libtpu: 0.0.40
codegen_flags: <defaults>
</compile_context>

<pallas_src>
import jax
import jax.numpy as jnp
from jax.experimental import pallas as pl
from jax.experimental.pallas import tpu as pltpu


def qnet_crc_kernel(x_ref, w1_ref, b1_ref, w2_ref, b2_ref, w3_ref, b3_ref, o_ref):
    """Fused batch-major MLP forward.

    Shapes per grid step (TB = batch tile, sublane axis):
      x:  (TB, 4)        w1: (4, 32)      b1: (1, 32)
      h1: (TB, 32)       w2: (32, 32)     b2: (1, 32)
      h2: (TB, 32)       w3: (32, n_acs)  b3: (1, n_acs)
      o:  (TB, n_acs)
    """
    x = x_ref[...]
    h1 = jnp.dot(x, w1_ref[...], preferred_element_type=jnp.float32) + b1_ref[...]
    h1 = jnp.maximum(h1, 0.0)
    h2 = jnp.dot(h1, w2_ref[...], preferred_element_type=jnp.float32) + b2_ref[...]
    h2 = jnp.maximum(h2, 0.0)
    q = jnp.dot(h2, w3_ref[...], preferred_element_type=jnp.float32) + b3_ref[...]
    o_ref[...] = q.astype(o_ref.dtype)


def qnet_crc_forward(state, params, *, block_b=2048):
    """Run the fused Qnet_CRC forward pass as a single Pallas TPU kernel.

    state:  (B, 4) float32
    params: dict with w1 (4,32), b1 (1,32), w2 (32,32), b2 (1,32),
            w3 (32, n_acs), b3 (1, n_acs)   (nn.Linear-equivalent, y = x@W + b)
    returns (B, n_acs) float32 Q-values.
    """
    w1, b1 = params["w1"], params["b1"]
    w2, b2 = params["w2"], params["b2"]
    w3, b3 = params["w3"], params["b3"]
    B = state.shape[0]
    state_shape = state.shape[1]
    hidden = w1.shape[1]
    n_acs = w3.shape[1]

    # Batch tile (sublane axis). Must be a multiple of 8 when tiling, or
    # equal to the full batch when the whole batch fits in one tile.
    if B > block_b:
        tb = max((block_b // 8) * 8, 8)
    else:
        tb = B
    grid = (pl.cdiv(B, tb),)

    flops = 2 * B * (state_shape * hidden + hidden * hidden + hidden * n_acs)
    bytes_accessed = 4 * (
        B * state_shape + B * n_acs                              # activations in/out
        + state_shape * hidden + hidden                          # layer 1 params
        + hidden * hidden + hidden                               # layer 2 params
        + hidden * n_acs + n_acs                                 # layer 3 params
    )
    cost = pl.CostEstimate(flops=flops, transcendentals=0,
                           bytes_accessed=bytes_accessed)

    q = pl.pallas_call(
        qnet_crc_kernel,
        out_shape=jax.ShapeDtypeStruct((B, n_acs), jnp.float32),
        grid=grid,
        in_specs=[
            pl.BlockSpec((tb, state_shape), lambda i: (i, 0)),    # x (batch-tiled)
            pl.BlockSpec((state_shape, hidden), lambda i: (0, 0)),  # w1 (pinned)
            pl.BlockSpec((1, hidden), lambda i: (0, 0)),          # b1
            pl.BlockSpec((hidden, hidden), lambda i: (0, 0)),     # w2
            pl.BlockSpec((1, hidden), lambda i: (0, 0)),          # b2
            pl.BlockSpec((hidden, n_acs), lambda i: (0, 0)),      # w3
            pl.BlockSpec((1, n_acs), lambda i: (0, 0)),           # b3
        ],
        out_specs=pl.BlockSpec((tb, n_acs), lambda i: (i, 0)),
        compiler_params=pltpu.CompilerParams(
            dimension_semantics=("parallel",),          # shard batch across TCs (v7x)
            vmem_limit_bytes=32 * 1024 * 1024,          # safe on v5e/v6e/v7x
        ),
        cost_estimate=cost,
    )(state, w1, b1, w2, b2, w3, b3)

    return q  # (B, n_acs)


def init_qnet_crc_params(key, n_agents):
    """Deterministic init matching PyTorch nn.Linear default (U[-1/sqrt(fan_in), 1/sqrt(fan_in)])."""
    state_shape = 4
    n_acs = 4 ** n_agents
    dims = [(state_shape, 32), (32, 32), (32, n_acs)]
    params = {}
    keys = jax.random.split(key, 2 * len(dims))
    for i, (fan_in, fan_out) in enumerate(dims):
        bound = 1.0 / jnp.sqrt(jnp.float32(fan_in))
        w = jax.random.uniform(keys[2 * i], (fan_in, fan_out),
                               minval=-bound, maxval=bound, dtype=jnp.float32)
        b = jax.random.uniform(keys[2 * i + 1], (1, fan_out),
                               minval=-bound, maxval=bound, dtype=jnp.float32)
        params[f"w{i + 1}"] = w
        params[f"b{i + 1}"] = b
    return params


def qnet_crc_forward_ref(state, params):
    """Pure-JAX reference for correctness checking."""
    h1 = jnp.maximum(state @ params["w1"] + params["b1"], 0.0)
    h2 = jnp.maximum(h1 @ params["w2"] + params["b2"], 0.0)
    return h2 @ params["w3"] + params["b3"]


# TODO(synk): select_acs (epsilon-greedy masking + numpy RNG rejection sampling) is
# host-side control flow, not part of forward(); intentionally not kernelized.


if __name__ == "__main__":
    key = jax.random.PRNGKey(0)
    k_param, k_state1, k_state2 = jax.random.split(key, 3)

    n_agents = 2          # -> n_acs = 16
    state_shape = 4

    params = init_qnet_crc_params(k_param, n_agents)

    # Small batch: single grid step, tile == full batch.
    state_small = jax.random.normal(k_state1, (8, state_shape), dtype=jnp.float32)
    q_small = jax.block_until_ready(qnet_crc_forward(state_small, params))
    q_small_ref = qnet_crc_forward_ref(state_small, params)
    assert q_small.shape == (8, 4 ** n_agents)
    assert jnp.allclose(q_small, q_small_ref, atol=1e-5, rtol=1e-5), "small-batch mismatch"

    # Batch larger than the tile and not a multiple of it: exercises the
    # batch grid, pinned weights, and the padded trailing block.
    state_big = jax.random.normal(k_state2, (300, state_shape), dtype=jnp.float32)
    q_big = jax.block_until_ready(qnet_crc_forward(state_big, params, block_b=128))
    q_big_ref = qnet_crc_forward_ref(state_big, params)
    assert q_big.shape == (300, 4 ** n_agents)
    assert jnp.allclose(q_big, q_big_ref, atol=1e-5, rtol=1e-5), "tiled-batch mismatch"

    print("KERNEL_OK")
</pallas_src>

<mosaic_0001>
module attributes {stable_mosaic.version = 11 : i64} {
  func.func @qnet_crc_kernel(%arg0: i32, %arg1: memref<8x4xf32, #tpu.memory_space<vmem>>, %arg2: memref<4x32xf32, #tpu.memory_space<vmem>>, %arg3: memref<1x32xf32, #tpu.memory_space<vmem>>, %arg4: memref<32x32xf32, #tpu.memory_space<vmem>>, %arg5: memref<1x32xf32, #tpu.memory_space<vmem>>, %arg6: memref<32x16xf32, #tpu.memory_space<vmem>>, %arg7: memref<1x16xf32, #tpu.memory_space<vmem>>, %arg8: memref<8x16xf32, #tpu.memory_space<vmem>>) attributes {dimension_semantics = [#tpu.dimension_semantics<parallel>], iteration_bounds = array<i64: 1>, scalar_prefetch = 0 : i64, scratch_operands = 0 : i64, tpu.core_type = #tpu.core_type<tc>, window_params = [{transform_indices = @transform_0, window_bounds = array<i64: 8, 4>}, {pipeline_mode = #tpu.pipeline_mode<synchronous>, transform_indices = @transform_1, window_bounds = array<i64: 4, 32>}, {pipeline_mode = #tpu.pipeline_mode<synchronous>, transform_indices = @transform_2, window_bounds = array<i64: 1, 32>}, {pipeline_mode = #tpu.pipeline_mode<synchronous>, transform_indices = @transform_3, window_bounds = array<i64: 32, 32>}, {pipeline_mode = #tpu.pipeline_mode<synchronous>, transform_indices = @transform_4, window_bounds = array<i64: 1, 32>}, {pipeline_mode = #tpu.pipeline_mode<synchronous>, transform_indices = @transform_5, window_bounds = array<i64: 32, 16>}, {pipeline_mode = #tpu.pipeline_mode<synchronous>, transform_indices = @transform_6, window_bounds = array<i64: 1, 16>}, {transform_indices = @transform_7, window_bounds = array<i64: 8, 16>}]} {
    %c0 = arith.constant 0 : index
    %c0_0 = arith.constant 0 : index
    %0 = vector.load %arg1[%c0, %c0_0] : memref<8x4xf32, #tpu.memory_space<vmem>>, vector<8x4xf32>
    %c0_1 = arith.constant 0 : index
    %c0_2 = arith.constant 0 : index
    %1 = vector.load %arg2[%c0_1, %c0_2] : memref<4x32xf32, #tpu.memory_space<vmem>>, vector<4x32xf32>
    %cst = arith.constant dense<0.000000e+00> : vector<8x32xf32>
    %2 = tpu.matmul %0, %1, %cst {dimension_numbers = #tpu.dot_dimension_numbers<[1], [0], [0], [1], [0, 0, 1, 1], [], []>} : vector<8x4xf32>, vector<4x32xf32>, vector<8x32xf32> -> vector<8x32xf32>
    %c0_3 = arith.constant 0 : index
    %c0_4 = arith.constant 0 : index
    %3 = vector.load %arg3[%c0_3, %c0_4] : memref<1x32xf32, #tpu.memory_space<vmem>>, vector<1x32xf32>
    %4 = vector.broadcast %3 : vector<1x32xf32> to vector<8x32xf32>
    %5 = arith.addf %2, %4 : vector<8x32xf32>
    %cst_5 = arith.constant 0.000000e+00 : f32
    %6 = vector.broadcast %cst_5 : f32 to vector<8x32xf32>
    %7 = arith.maximumf %5, %6 : vector<8x32xf32>
    %c0_6 = arith.constant 0 : index
    %c0_7 = arith.constant 0 : index
    %8 = vector.load %arg4[%c0_6, %c0_7] : memref<32x32xf32, #tpu.memory_space<vmem>>, vector<32x32xf32>
    %cst_8 = arith.constant dense<0.000000e+00> : vector<8x32xf32>
    %9 = tpu.matmul %7, %8, %cst_8 {dimension_numbers = #tpu.dot_dimension_numbers<[1], [0], [0], [1], [0, 0, 1, 1], [], []>} : vector<8x32xf32>, vector<32x32xf32>, vector<8x32xf32> -> vector<8x32xf32>
    %c0_9 = arith.constant 0 : index
    %c0_10 = arith.constant 0 : index
    %10 = vector.load %arg5[%c0_9, %c0_10] : memref<1x32xf32, #tpu.memory_space<vmem>>, vector<1x32xf32>
    %11 = vector.broadcast %10 : vector<1x32xf32> to vector<8x32xf32>
    %12 = arith.addf %9, %11 : vector<8x32xf32>
    %cst_11 = arith.constant 0.000000e+00 : f32
    %13 = vector.broadcast %cst_11 : f32 to vector<8x32xf32>
    %14 = arith.maximumf %12, %13 : vector<8x32xf32>
    %c0_12 = arith.constant 0 : index
    %c0_13 = arith.constant 0 : index
    %15 = vector.load %arg6[%c0_12, %c0_13] : memref<32x16xf32, #tpu.memory_space<vmem>>, vector<32x16xf32>
    %cst_14 = arith.constant dense<0.000000e+00> : vector<8x16xf32>
    %16 = tpu.matmul %14, %15, %cst_14 {dimension_numbers = #tpu.dot_dimension_numbers<[1], [0], [0], [1], [0, 0, 1, 1], [], []>} : vector<8x32xf32>, vector<32x16xf32>, vector<8x16xf32> -> vector<8x16xf32>
    %c0_15 = arith.constant 0 : index
    %c0_16 = arith.constant 0 : index
    %17 = vector.load %arg7[%c0_15, %c0_16] : memref<1x16xf32, #tpu.memory_space<vmem>>, vector<1x16xf32>
    %18 = vector.broadcast %17 : vector<1x16xf32> to vector<8x16xf32>
    %19 = arith.addf %16, %18 : vector<8x16xf32>
    %c0_17 = arith.constant 0 : index
    %c0_18 = arith.constant 0 : index
    %20 = vector.load %arg8[%c0_17, %c0_18] : memref<8x16xf32, #tpu.memory_space<vmem>>, vector<8x16xf32>
    tpu.vector_store %arg8[%c0_17, %c0_18], %19 {strides = array<i32>} : memref<8x16xf32, #tpu.memory_space<vmem>>, vector<8x16xf32>,
    return
  }
  func.func @transform_0(%arg0: i32) -> (i32, i32) {
    %c0_i32 = arith.constant 0 : i32
    %c0_i32_0 = arith.constant 0 : i32
    return %arg0, %c0_i32 : i32, i32
  }
  func.func @transform_1(%arg0: i32) -> (i32, i32) {
    %c0_i32 = arith.constant 0 : i32
    %c0_i32_0 = arith.constant 0 : i32
    %c0_i32_1 = arith.constant 0 : i32
    return %c0_i32, %c0_i32_0 : i32, i32
  }
  func.func @transform_2(%arg0: i32) -> (i32, i32) {
    %c0_i32 = arith.constant 0 : i32
    %c0_i32_0 = arith.constant 0 : i32
    %c0_i32_1 = arith.constant 0 : i32
    return %c0_i32, %c0_i32_0 : i32, i32
  }
  func.func @transform_3(%arg0: i32) -> (i32, i32) {
    %c0_i32 = arith.constant 0 : i32
    %c0_i32_0 = arith.constant 0 : i32
    %c0_i32_1 = arith.constant 0 : i32
    return %c0_i32, %c0_i32_0 : i32, i32
  }
  func.func @transform_4(%arg0: i32) -> (i32, i32) {
    %c0_i32 = arith.constant 0 : i32
    %c0_i32_0 = arith.constant 0 : i32
    %c0_i32_1 = arith.constant 0 : i32
    return %c0_i32, %c0_i32_0 : i32, i32
  }
  func.func @transform_5(%arg0: i32) -> (i32, i32) {
    %c0_i32 = arith.constant 0 : i32
    %c0_i32_0 = arith.constant 0 : i32
    %c0_i32_1 = arith.constant 0 : i32
    return %c0_i32, %c0_i32_0 : i32, i32
  }
  func.func @transform_6(%arg0: i32) -> (i32, i32) {
    %c0_i32 = arith.constant 0 : i32
    %c0_i32_0 = arith.constant 0 : i32
    %c0_i32_1 = arith.constant 0 : i32
    return %c0_i32, %c0_i32_0 : i32, i32
  }
  func.func @transform_7(%arg0: i32) -> (i32, i32) {
    %c0_i32 = arith.constant 0 : i32
    %c0_i32_0 = arith.constant 0 : i32
    return %arg0, %c0_i32 : i32, i32
  }
}

</mosaic_0001>

<llo_original>
// kernel: tpu_custom_call.1
$region0: #{tpu_custom_call.1}
  #allocation0 [shape = 'u32[]', space=smem, size = 0x4, offset = 0x4, fixed_abs, tag = 'smem constant byte address 0x4 - core index']
  #allocation1 [shape = 'u32[72,128]{1,0:T(1,128)}', space=vmem, size = 0x9000, scoped, tag = 'internal scratch']
  %s0 = inlined_call_operand.vmem [shape: f32[8,4], index: 0, kind: input, shape index: {}]
  %s1 = inlined_call_operand.vmem [shape: f32[4,32], index: 1, kind: input, shape index: {}]
  %s2 = inlined_call_operand.vmem [shape: f32[1,32], index: 2, kind: input, shape index: {}]
  %s3 = inlined_call_operand.vmem [shape: f32[32,32], index: 3, kind: input, shape index: {}]
  %s4 = inlined_call_operand.vmem [shape: f32[1,32], index: 4, kind: input, shape index: {}]
  %s5 = inlined_call_operand.vmem [shape: f32[32,16], index: 5, kind: input, shape index: {}]
  %s6 = inlined_call_operand.vmem [shape: f32[1,16], index: 6, kind: input, shape index: {}]
  %s7 = inlined_call_operand.hbm [shape: f32[8,16], index: 7, kind: output, shape index: {}]
  %s8 = sld [smem:[#allocation0]]
  $region38: #{tpu_custom_call.1} parent=0
    _
  %s10 = ssub.s32 1, %s8
  %s11 = scalar_select 0, %s10, %s8
  $region1: #{tpu_custom_call.1} parent=0
    #allocation2 [shape = 'u8[4096]{0}', space=vmem, size = 0x1000, scoped, tag = 'output window, operand 0, single buffered']
    #allocation3 [shape = 's32[1]{0}', space=sflag, size = 0x4, scoped, tag = 'scoped memory for tpu_custom_call.1']
    %12 = vsyncpa [#allocation3], 0
    // Predicated region
    $region2: #{tpu_custom_call.1} parent=1 // pred_check
      _
    $region3: #{tpu_custom_call.1} parent=1 // pred_check_branch
      %14 = sbr.rel (0) target = $region5
    $region4: #{tpu_custom_call.1} parent=1 // pred_region
      _
    $region5: #{tpu_custom_call.1} parent=1 // pred_fallthru
      _
    // Predicated region
    $region6: #{tpu_custom_call.1} parent=1 // pred_check
      _
    $region7: #{tpu_custom_call.1} parent=1 // pred_check_branch
      %16 = sbr.rel (0) target = $region9
    $region8: #{tpu_custom_call.1} parent=1 // pred_region
      _
    $region9: #{tpu_custom_call.1} parent=1 // pred_fallthru
      _
    // Predicated region
    $region10: #{tpu_custom_call.1} parent=1 // pred_check
      _
    $region11: #{tpu_custom_call.1} parent=1 // pred_check_branch
      %18 = sbr.rel (0) target = $region13
    $region12: #{tpu_custom_call.1} parent=1 // pred_region
      _
    $region13: #{tpu_custom_call.1} parent=1 // pred_fallthru
      _
    // Predicated region
    $region14: #{tpu_custom_call.1} parent=1 // pred_check
      _
    $region15: #{tpu_custom_call.1} parent=1 // pred_check_branch
      %20 = sbr.rel (0) target = $region17
    $region16: #{tpu_custom_call.1} parent=1 // pred_region
      _
    $region17: #{tpu_custom_call.1} parent=1 // pred_fallthru
      _
    // Predicated region
    $region18: #{tpu_custom_call.1} parent=1 // pred_check
      _
    $region19: #{tpu_custom_call.1} parent=1 // pred_check_branch
      %22 = sbr.rel (0) target = $region21
    $region20: #{tpu_custom_call.1} parent=1 // pred_region
      _
    $region21: #{tpu_custom_call.1} parent=1 // pred_fallthru
      _
    // Predicated region
    $region22: #{tpu_custom_call.1} parent=1 // pred_check
      _
    $region23: #{tpu_custom_call.1} parent=1 // pred_check_branch
      %24 = sbr.rel (0) target = $region25
    $region24: #{tpu_custom_call.1} parent=1 // pred_region
      _
    $region25: #{tpu_custom_call.1} parent=1 // pred_fallthru
      _
    // Predicated region
    $region26: #{tpu_custom_call.1} parent=1 // pred_check
      _
    $region27: #{tpu_custom_call.1} parent=1 // pred_check_branch
      %26 = sbr.rel (0) target = $region29
    $region28: #{tpu_custom_call.1} parent=1 // pred_region
      _
    $region29: #{tpu_custom_call.1} parent=1 // pred_fallthru
      _
    %v27 = vld [vmem:[%s0] sm:$0xff]
    %v28 = vld [vmem:[%s1] sm:$0xf]
    %v29 = vld [vmem:[%s2] sm:$0x1]
    %v31 = vperm.slane %v29, 0
    %vm33 = vcmask 31744
    %v35 = vsel %vm33, %v27, 0
    %vm37 = vcmask 1043456
    %v39 = vsel %vm37, %v28, 0
    %41 = vmatpush.msra.mxu0 0.0
    %42 = vmatpush.msra.mxu0 0.0
    %43 = vmatpush.msra.mxu0 0.0
    %44 = vmatpush.msra.mxu0 0.0
    %45 = vmatpush.msra.mxu0 0.0
    %46 = vmatpush.msra.mxu0 0.0
    %47 = vmatpush.msra.mxu0 0.0
    %48 = vmatpush.msra.mxu0 0.0
    %49 = vmatpush.msra.mxu0 0.0
    %50 = vmatpush.msra.mxu0 0.0
    %51 = vmatpush.msra.mxu0 0.0
    %52 = vmatpush.msra.mxu0 0.0
    %53 = vmatpush.msra.mxu0 0.0
    %54 = vmatpush.msra.mxu0 0.0
    %55 = vmatpush.msra.mxu0 0.0
    %56 = vmatpush.msra.mxu0 %v39
    %57 = vmatmul.f32.gmra.mxu0 %v35
    %v58 = vpop.f32.mrf.mxu0
    %v59 = vadd.f32 %v31, %v58
    %60 = vdwg.mxu0
    %v61 = vmax.f32 %v59, 0.0
    %v62 = vld [vmem:[%s3] sm:$0xff]
    %v63 = vld [vmem:[%s3 + $0x8] sm:$0xff]
    %v64 = vld [vmem:[%s3 + $0x10] sm:$0xff]
    %v65 = vld [vmem:[%s3 + $0x18] sm:$0xff]
    %v66 = vld [vmem:[%s4] sm:$0x1]
    %v68 = vperm.slane %v66, 0
    %vm70 = vcmask 261120
    %v72 = vsel %vm70, %v61, 0
    %74 = vmatpush.msra.mxu0 0.0
    %75 = vmatpush.msra.mxu0 0.0
    %76 = vmatpush.msra.mxu0 0.0
    %77 = vmatpush.msra.mxu0 0.0
    %78 = vmatpush.msra.mxu0 0.0
    %79 = vmatpush.msra.mxu0 0.0
    %80 = vmatpush.msra.mxu0 0.0
    %81 = vmatpush.msra.mxu0 0.0
    %82 = vmatpush.msra.mxu0 0.0
    %83 = vmatpush.msra.mxu0 0.0
    %84 = vmatpush.msra.mxu0 0.0
    %85 = vmatpush.msra.mxu0 0.0
    %86 = vmatpush.msra.mxu0 %v65
    %87 = vmatpush.msra.mxu0 %v64
    %88 = vmatpush.msra.mxu0 %v63
    %89 = vmatpush.msra.mxu0 %v62
    %90 = vmatmul.f32.gmra.mxu0 %v72
    %v91 = vpop.f32.mrf.mxu0
    %v92 = vadd.f32 %v68, %v91
    %93 = vdwg.mxu0
    %v94 = vmax.f32 %v92, 0.0
    %v95 = vld [vmem:[%s5] sm:$0xff]
    %v96 = vld [vmem:[%s5 + $0x8] sm:$0xff]
    %v97 = vld [vmem:[%s5 + $0x10] sm:$0xff]
    %v98 = vld [vmem:[%s5 + $0x18] sm:$0xff]
    %v99 = vld [vmem:[%s6] sm:$0x1]
    %v101 = vperm.slane %v99, 0
    %v104 = vsel %vm70, %v94, 0
    %106 = vmatpush.msra.mxu0 0.0
    %107 = vmatpush.msra.mxu0 0.0
    %108 = vmatpush.msra.mxu0 0.0
    %109 = vmatpush.msra.mxu0 0.0
    %110 = vmatpush.msra.mxu0 0.0
    %111 = vmatpush.msra.mxu0 0.0
    %112 = vmatpush.msra.mxu0 0.0
    %113 = vmatpush.msra.mxu0 0.0
    %114 = vmatpush.msra.mxu0 0.0
    %115 = vmatpush.msra.mxu0 0.0
    %116 = vmatpush.msra.mxu0 0.0
    %117 = vmatpush.msra.mxu0 0.0
    %118 = vmatpush.msra.mxu0 %v98
    %119 = vmatpush.msra.mxu0 %v97
    %120 = vmatpush.msra.mxu0 %v96
    %121 = vmatpush.msra.mxu0 %v95
    %122 = vmatmul.f32.gmra.mxu0 %v104
    %v123 = vpop.f32.mrf.mxu0
    %v124 = vadd.f32 %v101, %v123
    %125 = vdwg.mxu0
    %vm126 = vcmask 130048
    %127 = vst.msk [vmem:[#allocation2] sm:$0xff] %vm126, %v124
    // Predicated region
    $region30: #{tpu_custom_call.1} parent=1 // pred_check
      _
    $region31: #{tpu_custom_call.1} parent=1 // pred_check_branch
      %129 = sbr.rel (0) target = $region33
    $region32: #{tpu_custom_call.1} parent=1 // pred_region
      %131 = vsyncadd [#allocation3], 0
      %s133 = sshll.u32 [#allocation2], 4
      %s134 = int_to_ptr.vmem [resolvable:$true] %s133
      %s135 = sshll.u32 %s7, 4
      %s136 = int_to_ptr.hbm [resolvable:$true] %s135
      %138 = dma.vmem_to_hbm [thread:$0]  %s134, 128, %s136, [#allocation3]
    $region33: #{tpu_custom_call.1} parent=1 // pred_fallthru
      _
    // Predicated region
    $region34: #{tpu_custom_call.1} parent=1 // pred_check
      _
    $region35: #{tpu_custom_call.1} parent=1 // pred_check_branch
      %140 = sbr.rel (0) target = $region37
    $region36: #{tpu_custom_call.1} parent=1 // pred_region
      %142 = dma.done [#allocation3], 128
    $region37: #{tpu_custom_call.1} parent=1 // pred_fallthru
      _
    %143 = vsyncpa [#allocation3], 1

</llo_original>
